<compile_context>
chip_gen: v6e
topology: v6e:2x2x1
jax: 0.10.0
libtpu: 0.0.40
codegen_flags: <defaults>
</compile_context>

<pallas_src>
import jax
import jax.numpy as jnp
from jax.experimental import pallas as pl
from jax.experimental.pallas import tpu as pltpu


def _identity_copy_kernel(x_ref, o_ref):
    # Hot path: full-tile load + store (pure HBM-bandwidth-bound copy).
    o_ref[...] = x_ref[...]


def _choose_layout(total_elems, last_dim, itemsize):
    """Pick a lane-dense (rows, lane) view and a VMEM-friendly row tile."""
    # Lane width: biggest multiple of 128 that divides the element count.
    lane = None
    for cand in (2048, 1024, 512, 256, 128):
        if total_elems % cand == 0:
            lane = cand
            break
    if lane is None:
        # Fallback for odd shapes: keep the original trailing dim (block last
        # dim == full array dim satisfies the (8,128) rule via the exception).
        lane = last_dim if (last_dim > 0 and total_elems % last_dim == 0) else total_elems
    rows = total_elems // lane

    # Sublane packing: 8 (f32), 16 (bf16/f16), 32 (int8/fp8).
    pack = 8 * max(1, 4 // max(1, itemsize))

    # Target ~4 MiB per block -> in+out, double-buffered ~= 16 MiB of VMEM.
    target_bytes = 4 * 1024 * 1024
    target_rows = max(pack, target_bytes // max(1, lane * itemsize))
    target_rows = max(pack, (target_rows // pack) * pack)

    if rows <= target_rows:
        tile_rows = rows          # full-dim block (exception to the 8-rule)
    else:
        tile_rows = target_rows   # multiple of the sublane packing
    return rows, lane, tile_rows


def dummy_wte_forward(x):
    """Identity forward (DummyWTE.forward) via a tiled Pallas copy kernel.

    Accepts any-rank input; internally viewed as a lane-dense 2D slab so the
    last dim maps to (a multiple of) 128 lanes and rows are pipelined through
    VMEM in large double-buffered tiles.
    """
    # NOTE: the mathematically optimal implementation is `return x` (zero HBM
    # traffic); the kernel below is kept to satisfy the "implement as Pallas"
    # requirement while minimizing its cost.
    orig_shape = x.shape
    total = 1
    for d in orig_shape:
        total *= int(d)
    if total == 0:
        return x  # nothing to copy

    last_dim = int(orig_shape[-1]) if len(orig_shape) >= 1 else total
    itemsize = jnp.dtype(x.dtype).itemsize
    rows, lane, tile_rows = _choose_layout(total, last_dim, itemsize)

    x2d = x.reshape(rows, lane)
    grid_rows = pl.cdiv(rows, tile_rows)

    out2d = pl.pallas_call(
        _identity_copy_kernel,
        out_shape=jax.ShapeDtypeStruct((rows, lane), x.dtype),
        grid_spec=pltpu.PrefetchScalarGridSpec(
            num_scalar_prefetch=0,
            grid=(grid_rows,),
            in_specs=[pl.BlockSpec((tile_rows, lane), lambda i: (i, 0))],
            out_specs=pl.BlockSpec((tile_rows, lane), lambda i: (i, 0)),
        ),
        compiler_params=pltpu.CompilerParams(
            # Row tiles are independent -> shard across TensorCores (v7x).
            dimension_semantics=("parallel",),
            # Headroom under v7x's 64 MiB physical VMEM; generous on v5e/v6e.
            vmem_limit_bytes=48 * 1024 * 1024,
        ),
        # Identity copy: donate the input buffer to the output (P8), saving
        # the separate output allocation.
        input_output_aliases={0: 0},
    )(x2d)

    return out2d.reshape(orig_shape)


if __name__ == "__main__":
    key = jax.random.PRNGKey(0)
    # DummyWTE stands in for a token-embedding module: (batch, seq, hidden).
    batch, seq, hidden = 2, 8, 32
    x = jax.random.normal(key, (batch, seq, hidden), dtype=jnp.float32)

    y = dummy_wte_forward(x)
    jax.block_until_ready(y)

    assert y.shape == x.shape
    assert y.dtype == x.dtype
    assert bool(jnp.all(y == x))
    print("KERNEL_OK")
</pallas_src>

<mosaic_0001>
module attributes {stable_mosaic.version = 11 : i64} {
  func.func @_identity_copy_kernel(%arg0: i32, %arg1: memref<1x512xf32, #tpu.memory_space<vmem>>, %arg2: memref<1x512xf32, #tpu.memory_space<vmem>>) attributes {dimension_semantics = [#tpu.dimension_semantics<parallel>], iteration_bounds = array<i64: 1>, scalar_prefetch = 0 : i64, scratch_operands = 0 : i64, tpu.core_type = #tpu.core_type<tc>, window_params = [{transform_indices = @transform_0, window_bounds = array<i64: 1, 512>}, {transform_indices = @transform_1, window_bounds = array<i64: 1, 512>}]} {
    %c0 = arith.constant 0 : index
    %c0_0 = arith.constant 0 : index
    %0 = vector.load %arg1[%c0, %c0_0] : memref<1x512xf32, #tpu.memory_space<vmem>>, vector<1x512xf32>
    %c0_1 = arith.constant 0 : index
    %c0_2 = arith.constant 0 : index
    %1 = vector.load %arg2[%c0_1, %c0_2] : memref<1x512xf32, #tpu.memory_space<vmem>>, vector<1x512xf32>
    tpu.vector_store %arg2[%c0_1, %c0_2], %0 {strides = array<i32>} : memref<1x512xf32, #tpu.memory_space<vmem>>, vector<1x512xf32>,
    return
  }
  func.func @transform_0(%arg0: i32) -> (i32, i32) {
    %c0_i32 = arith.constant 0 : i32
    %c0_i32_0 = arith.constant 0 : i32
    return %arg0, %c0_i32 : i32, i32
  }
  func.func @transform_1(%arg0: i32) -> (i32, i32) {
    %c0_i32 = arith.constant 0 : i32
    %c0_i32_0 = arith.constant 0 : i32
    return %arg0, %c0_i32 : i32, i32
  }
}

</mosaic_0001>

<llo_original>
// kernel: tpu_custom_call.1
$region0: #{tpu_custom_call.1}
  #allocation0 [shape = 'u32[]', space=smem, size = 0x4, offset = 0x4, fixed_abs, tag = 'smem constant byte address 0x4 - core index']
  #allocation1 [shape = 'u32[144,128]{1,0:T(1,128)}', space=vmem, size = 0x12000, scoped, tag = 'internal scratch']
  %s0 = inlined_call_operand.hbm [shape: f32[1,512], index: 0, kind: input, shape index: {}, may-alias: {0,1}]
  %s1 = inlined_call_operand.hbm [shape: f32[1,512], index: 1, kind: output, shape index: {}, may-alias: {0,1}]
  %s2 = sld [smem:[#allocation0]]
  $region18: #{tpu_custom_call.1} parent=0
    _
  %s4 = ssub.s32 1, %s2
  %s5 = scalar_select 0, %s4, %s2
  $region1: #{tpu_custom_call.1} parent=0
    #allocation2 [shape = 'u8[2048]{0}', space=vmem, size = 0x800, scoped, tag = 'input window, operand 0, single buffered']
    #allocation3 [shape = 's32[1]{0}', space=sflag, size = 0x4, scoped, tag = 'scoped memory for tpu_custom_call.1']
    #allocation4 [shape = 's32[1]{0}', space=sflag, size = 0x4, scoped, tag = 'scoped memory for tpu_custom_call.1']
    #allocation5 [shape = 'u8[2048]{0}', space=vmem, size = 0x800, scoped, tag = 'output window, operand 0, single buffered']
    %6 = vsyncpa [#allocation3], 0
    %7 = vsyncpa [#allocation4], 0
    // Predicated region
    $region2: #{tpu_custom_call.1} parent=1 // pred_check
      _
    $region3: #{tpu_custom_call.1} parent=1 // pred_check_branch
      %9 = sbr.rel (0) target = $region5
    $region4: #{tpu_custom_call.1} parent=1 // pred_region
      %s11 = ssub.s32 64, 64
      %12 = vsyncadd [#allocation3], %s11
      %s14 = sshll.u32 [#allocation2], 4
      %s15 = int_to_ptr.vmem [resolvable:$true] %s14
      %17 = dma.hbm_to_vmem [thread:$0]  %s0, 64, %s15, [#allocation3]
    $region5: #{tpu_custom_call.1} parent=1 // pred_fallthru
      _
    // Predicated region
    $region6: #{tpu_custom_call.1} parent=1 // pred_check
      _
    $region7: #{tpu_custom_call.1} parent=1 // pred_check_branch
      %19 = sbr.rel (0) target = $region9
    $region8: #{tpu_custom_call.1} parent=1 // pred_region
      %20 = dma.done [#allocation3], 64
    $region9: #{tpu_custom_call.1} parent=1 // pred_fallthru
      _
    %v21 = vld [vmem:[#allocation2] sm:$0xf]
    %v22 = vlaneseq
    %vm23 = vcmp.ge.s32.totalorder %v22, 0
    %vm24 = vcmp.lt.s32.totalorder %v22, 512
    %vm25 = vmand %vm23, %vm24
    %26 = vst.msk [vmem:[#allocation5] sm:$0xf] %vm25, %v21
    // Predicated region
    $region10: #{tpu_custom_call.1} parent=1 // pred_check
      _
    $region11: #{tpu_custom_call.1} parent=1 // pred_check_branch
      %28 = sbr.rel (0) target = $region13
    $region12: #{tpu_custom_call.1} parent=1 // pred_region
      %s30 = ssub.s32 64, 64
      %31 = vsyncadd [#allocation4], %s30
      %s33 = sshll.u32 [#allocation5], 4
      %s34 = int_to_ptr.vmem [resolvable:$true] %s33
      %36 = dma.vmem_to_hbm [thread:$0]  %s34, 64, %s1, [#allocation4]
    $region13: #{tpu_custom_call.1} parent=1 // pred_fallthru
      _
    // Predicated region
    $region14: #{tpu_custom_call.1} parent=1 // pred_check
      _
    $region15: #{tpu_custom_call.1} parent=1 // pred_check_branch
      %38 = sbr.rel (0) target = $region17
    $region16: #{tpu_custom_call.1} parent=1 // pred_region
      %39 = dma.done [#allocation4], 64
    $region17: #{tpu_custom_call.1} parent=1 // pred_fallthru
      _
    %40 = vsyncpa [#allocation3], 1
    %41 = vsyncpa [#allocation4], 1

</llo_original>
